<compile_context>
chip_gen: v6e
topology: v6e:2x2x1
jax: 0.10.0
libtpu: 0.0.40
codegen_flags: <defaults>
</compile_context>

<pallas_src>
import functools

import numpy as np
import jax
import jax.numpy as jnp
from jax import lax
from jax.experimental import pallas as pl
from jax.experimental.pallas import tpu as pltpu


# ----------------------------------------------------------------------------
# Fused residual-block kernel (one grid step == one image)
# ----------------------------------------------------------------------------
def _resnet_block_kernel(x_ref, masks_ref, w1_ref, s1_ref, b1_ref,
                         w2_ref, s2_ref, b2_ref, *rest,
                         W, HW, conv1_taps, conv2_taps, has_sc_conv):
    if has_sc_conv:
        wsc_ref, ssc_ref, bsc_ref, o_ref = rest
    else:
        (o_ref,) = rest

    x = x_ref[0]                    # (Cin, H*W)  lane-dense per-image slab
    masks = masks_ref[...]          # (n_offsets, H*W)  0/1 validity per offset

    def conv(inp, w2d_ref, taps):
        # Stack the k*k shifted+masked taps into one (k*k*Cin, H*W) slab and
        # issue a SINGLE MXU matmul with k*k-times deeper contraction.
        slabs = []
        for dy, dx, midx in taps:
            if dy == 0 and dx == 0:
                slabs.append(inp)
                continue
            d = dy * W + dx                                  # tap[j] = inp[j + d]
            tap = pltpu.roll(inp, shift=(-d) % HW, axis=1)   # jnp.roll convention
            slabs.append(tap * masks[midx:midx + 1])         # zero out-of-image
        stacked = jnp.concatenate(slabs, axis=0)             # (k*k*Cin, H*W)
        return jnp.dot(w2d_ref[...], stacked,
                       preferred_element_type=jnp.float32)   # (Cout, H*W)

    h1 = conv(x, w1_ref, conv1_taps)                          # conv1
    h1 = jnp.maximum(h1 * s1_ref[...] + b1_ref[...], 0.0)     # BN1 (folded) + ReLU

    y = conv(h1, w2_ref, conv2_taps)                          # conv2 (3x3)
    y = y * s2_ref[...] + b2_ref[...]                         # BN2 (folded)

    if has_sc_conv:                                           # 1x1 conv + BN shortcut
        sc = jnp.dot(wsc_ref[...], x, preferred_element_type=jnp.float32)
        sc = sc * ssc_ref[...] + bsc_ref[...]
    else:                                                     # identity shortcut
        sc = x

    o_ref[0] = jnp.maximum(y + sc, 0.0)


# ----------------------------------------------------------------------------
# Wrapper: BN folding, weight reshape, static masks, grid over batch
# ----------------------------------------------------------------------------
def _fold_bn(bn, eps=1e-5):
    gamma, beta, mean, var = bn
    scale = gamma / jnp.sqrt(var + eps)
    shift = beta - mean * scale
    return (scale.reshape(-1, 1).astype(jnp.float32),
            shift.reshape(-1, 1).astype(jnp.float32))


def _conv_w2d(w):
    # (Cout, Cin, kh, kw) -> (Cout, k*k*Cin); column index (kh*k+kw)*Cin + ci
    cout, cin, kh, kw = w.shape
    return jnp.transpose(w, (0, 2, 3, 1)).reshape(cout, kh * kw * cin).astype(jnp.float32)


def basic_resnet_block(x_nchw, params):
    n, cin, h, w = x_nchw.shape
    cout, _, k1, _ = params["w1"].shape
    hw = h * w
    assert k1 % 2 == 1, "'same' padding requires an odd kernel size"
    # TODO(synk): pad H*W to a multiple of 128 for general shapes.
    assert hw % 128 == 0, "per-image lane dim (H*W) must be a multiple of 128"
    has_sc_conv = "wsc" in params

    # Static tap lists + shared out-of-image masks (computed once, host-side).
    offset_index = {}

    def build_taps(k):
        p = (k - 1) // 2
        taps = []
        for kh in range(k):
            for kw in range(k):
                dy, dx = kh - p, kw - p
                if dy == 0 and dx == 0:
                    taps.append((0, 0, -1))
                else:
                    midx = offset_index.setdefault((dy, dx), len(offset_index))
                    taps.append((dy, dx, midx))
        return tuple(taps)

    conv1_taps = build_taps(k1)
    conv2_taps = build_taps(3)

    j = np.arange(hw)
    col, row = j % w, j // w
    mask_rows = np.zeros((len(offset_index), hw), np.float32)
    for (dy, dx), idx in offset_index.items():
        mask_rows[idx] = ((col + dx >= 0) & (col + dx < w) &
                          (row + dy >= 0) & (row + dy < h)).astype(np.float32)
    masks = jnp.asarray(mask_rows)

    s1, b1 = _fold_bn(params["bn1"])
    s2, b2 = _fold_bn(params["bn2"])

    x3 = x_nchw.reshape(n, cin, hw).astype(jnp.float32)   # pure reshape, no transpose

    inputs = [x3, masks, _conv_w2d(params["w1"]), s1, b1,
              _conv_w2d(params["w2"]), s2, b2]

    def const_spec(shape):
        return pl.BlockSpec(shape, lambda i, _s=len(shape): (0,) * _s)

    in_specs = [
        pl.BlockSpec((1, cin, hw), lambda i: (i, 0, 0)),   # per-image activation block
        const_spec(masks.shape),
        const_spec((cout, k1 * k1 * cin)), const_spec((cout, 1)), const_spec((cout, 1)),
        const_spec((cout, 9 * cout)), const_spec((cout, 1)), const_spec((cout, 1)),
    ]
    if has_sc_conv:
        ssc, bsc = _fold_bn(params["bnsc"])
        inputs += [params["wsc"].reshape(cout, cin).astype(jnp.float32), ssc, bsc]
        in_specs += [const_spec((cout, cin)), const_spec((cout, 1)), const_spec((cout, 1))]

    kernel = functools.partial(
        _resnet_block_kernel, W=w, HW=hw,
        conv1_taps=conv1_taps, conv2_taps=conv2_taps, has_sc_conv=has_sc_conv)

    out = pl.pallas_call(
        kernel,
        out_shape=jax.ShapeDtypeStruct((n, cout, hw), jnp.float32),
        grid=(n,),
        in_specs=in_specs,
        out_specs=pl.BlockSpec((1, cout, hw), lambda i: (i, 0, 0)),
        compiler_params=pltpu.CompilerParams(
            dimension_semantics=("parallel",)),
    )(*inputs)
    return out.reshape(n, cout, h, w)


# ----------------------------------------------------------------------------
# Deterministic parameter init (PyTorch-style; BN stats randomized so eval-mode
# BN is non-trivial)
# ----------------------------------------------------------------------------
def init_block_params(key, in_channels, out_channels, kernel_size, stride=1):
    assert stride == 1  # TODO(synk): stride != 1 not supported by the fused kernel.

    def conv_w(k, cout, cin, ksz):
        bound = 1.0 / (cin * ksz * ksz) ** 0.5
        return jax.random.uniform(k, (cout, cin, ksz, ksz), jnp.float32, -bound, bound)

    def bn_stats(k):
        kg, kb, km, kv = jax.random.split(k, 4)
        return (jax.random.uniform(kg, (out_channels,), jnp.float32, 0.5, 1.5),   # gamma
                jax.random.uniform(kb, (out_channels,), jnp.float32, -0.5, 0.5),  # beta
                jax.random.normal(km, (out_channels,), jnp.float32) * 0.5,        # running_mean
                jax.random.uniform(kv, (out_channels,), jnp.float32, 0.5, 1.5))   # running_var

    k1, k2, k3, k4, k5, k6 = jax.random.split(key, 6)
    params = {"w1": conv_w(k1, out_channels, in_channels, kernel_size),
              "bn1": bn_stats(k2),
              "w2": conv_w(k3, out_channels, out_channels, 3),
              "bn2": bn_stats(k4)}
    if stride != 1 or in_channels != out_channels:
        params["wsc"] = conv_w(k5, out_channels, in_channels, 1)
        params["bnsc"] = bn_stats(k6)
    return params


# ----------------------------------------------------------------------------
# Pure-JAX reference (correctness check)
# ----------------------------------------------------------------------------
def reference_forward(x, params, eps=1e-5):
    def conv(inp, w):
        pad = (w.shape[2] - 1) // 2
        return lax.conv_general_dilated(
            inp, w, (1, 1), [(pad, pad), (pad, pad)],
            dimension_numbers=("NCHW", "OIHW", "NCHW"),
            precision=lax.Precision.HIGHEST)

    def bn(inp, stats):
        gamma, beta, mean, var = (s.reshape(1, -1, 1, 1) for s in stats)
        return (inp - mean) / jnp.sqrt(var + eps) * gamma + beta

    out = jnp.maximum(bn(conv(x, params["w1"]), params["bn1"]), 0.0)
    out = bn(conv(out, params["w2"]), params["bn2"])
    if "wsc" in params:
        res = bn(conv(x, params["wsc"]), params["bnsc"])
    else:
        res = x
    return jnp.maximum(out + res, 0.0)


# ----------------------------------------------------------------------------
if __name__ == "__main__":
    key = jax.random.PRNGKey(0)
    kx, kp1, kp2 = jax.random.split(key, 3)

    # Config A: in_channels != out_channels  ->  1x1-conv + BN shortcut path.
    n, cin, h, w = 2, 4, 16, 16
    cout = 8
    x = jax.random.normal(kx, (n, cin, h, w), jnp.float32)
    params_a = init_block_params(kp1, cin, cout, kernel_size=3)
    out_a = jax.block_until_ready(basic_resnet_block(x, params_a))
    ref_a = jax.block_until_ready(reference_forward(x, params_a))
    assert out_a.shape == (n, cout, h, w), out_a.shape
    assert jnp.allclose(out_a, ref_a, rtol=1e-2, atol=1e-2), (
        float(jnp.max(jnp.abs(out_a - ref_a))))

    # Config B: in_channels == out_channels  ->  identity shortcut, 5x5 conv1.
    params_b = init_block_params(kp2, cout, cout, kernel_size=5)
    out_b = jax.block_until_ready(basic_resnet_block(out_a, params_b))
    ref_b = jax.block_until_ready(reference_forward(out_a, params_b))
    assert jnp.allclose(out_b, ref_b, rtol=1e-2, atol=1e-2), (
        float(jnp.max(jnp.abs(out_b - ref_b))))

    print("KERNEL_OK")
</pallas_src>

<mosaic_0001>
module attributes {stable_mosaic.version = 11 : i64} {
  func.func @_resnet_block_kernel(%arg0: i32, %arg1: memref<1x4x256xf32, #tpu.memory_space<vmem>>, %arg2: memref<8x256xf32, #tpu.memory_space<vmem>>, %arg3: memref<8x36xf32, #tpu.memory_space<vmem>>, %arg4: memref<8x1xf32, #tpu.memory_space<vmem>>, %arg5: memref<8x1xf32, #tpu.memory_space<vmem>>, %arg6: memref<8x72xf32, #tpu.memory_space<vmem>>, %arg7: memref<8x1xf32, #tpu.memory_space<vmem>>, %arg8: memref<8x1xf32, #tpu.memory_space<vmem>>, %arg9: memref<8x4xf32, #tpu.memory_space<vmem>>, %arg10: memref<8x1xf32, #tpu.memory_space<vmem>>, %arg11: memref<8x1xf32, #tpu.memory_space<vmem>>, %arg12: memref<1x8x256xf32, #tpu.memory_space<vmem>>) attributes {dimension_semantics = [#tpu.dimension_semantics<parallel>], iteration_bounds = array<i64: 2>, scalar_prefetch = 0 : i64, scratch_operands = 0 : i64, tpu.core_type = #tpu.core_type<tc>, window_params = [{transform_indices = @transform_0, window_bounds = array<i64: 1, 4, 256>}, {pipeline_mode = #tpu.pipeline_mode<synchronous>, transform_indices = @transform_1, window_bounds = array<i64: 8, 256>}, {pipeline_mode = #tpu.pipeline_mode<synchronous>, transform_indices = @transform_2, window_bounds = array<i64: 8, 36>}, {pipeline_mode = #tpu.pipeline_mode<synchronous>, transform_indices = @transform_3, window_bounds = array<i64: 8, 1>}, {pipeline_mode = #tpu.pipeline_mode<synchronous>, transform_indices = @transform_4, window_bounds = array<i64: 8, 1>}, {pipeline_mode = #tpu.pipeline_mode<synchronous>, transform_indices = @transform_5, window_bounds = array<i64: 8, 72>}, {pipeline_mode = #tpu.pipeline_mode<synchronous>, transform_indices = @transform_6, window_bounds = array<i64: 8, 1>}, {pipeline_mode = #tpu.pipeline_mode<synchronous>, transform_indices = @transform_7, window_bounds = array<i64: 8, 1>}, {pipeline_mode = #tpu.pipeline_mode<synchronous>, transform_indices = @transform_8, window_bounds = array<i64: 8, 4>}, {pipeline_mode = #tpu.pipeline_mode<synchronous>, transform_indices = @transform_9, window_bounds = array<i64: 8, 1>}, {pipeline_mode = #tpu.pipeline_mode<synchronous>, transform_indices = @transform_10, window_bounds = array<i64: 8, 1>}, {transform_indices = @transform_11, window_bounds = array<i64: 1, 8, 256>}]} {
    %c0 = arith.constant 0 : index
    %c0_0 = arith.constant 0 : index
    %c0_1 = arith.constant 0 : index
    %0 = vector.load %arg1[%c0, %c0_0, %c0_1] : memref<1x4x256xf32, #tpu.memory_space<vmem>>, vector<1x4x256xf32>
    %1 = vector.shape_cast %0 : vector<1x4x256xf32> to vector<4x256xf32>
    %c0_2 = arith.constant 0 : index
    %c0_3 = arith.constant 0 : index
    %2 = vector.load %arg2[%c0_2, %c0_3] : memref<8x256xf32, #tpu.memory_space<vmem>>, vector<8x256xf32>
    %c17_i32 = arith.constant 17 : i32
    %3 = tpu.dynamic_rotate %1 by %c17_i32 dim 1 : vector<4x256xf32>, i32 -> vector<4x256xf32>
    %4 = vector.extract_strided_slice %2 {offsets = [0, 0], sizes = [1, 256], strides = [1, 1]} : vector<8x256xf32> to vector<1x256xf32>
    %5 = vector.broadcast %4 : vector<1x256xf32> to vector<4x256xf32>
    %6 = arith.mulf %3, %5 : vector<4x256xf32>
    %c16_i32 = arith.constant 16 : i32
    %7 = tpu.dynamic_rotate %1 by %c16_i32 dim 1 : vector<4x256xf32>, i32 -> vector<4x256xf32>
    %8 = vector.extract_strided_slice %2 {offsets = [1, 0], sizes = [1, 256], strides = [1, 1]} : vector<8x256xf32> to vector<1x256xf32>
    %9 = vector.broadcast %8 : vector<1x256xf32> to vector<4x256xf32>
    %10 = arith.mulf %7, %9 : vector<4x256xf32>
    %c15_i32 = arith.constant 15 : i32
    %11 = tpu.dynamic_rotate %1 by %c15_i32 dim 1 : vector<4x256xf32>, i32 -> vector<4x256xf32>
    %12 = vector.extract_strided_slice %2 {offsets = [2, 0], sizes = [1, 256], strides = [1, 1]} : vector<8x256xf32> to vector<1x256xf32>
    %13 = vector.broadcast %12 : vector<1x256xf32> to vector<4x256xf32>
    %14 = arith.mulf %11, %13 : vector<4x256xf32>
    %c1_i32 = arith.constant 1 : i32
    %15 = tpu.dynamic_rotate %1 by %c1_i32 dim 1 : vector<4x256xf32>, i32 -> vector<4x256xf32>
    %16 = vector.extract_strided_slice %2 {offsets = [3, 0], sizes = [1, 256], strides = [1, 1]} : vector<8x256xf32> to vector<1x256xf32>
    %17 = vector.broadcast %16 : vector<1x256xf32> to vector<4x256xf32>
    %18 = arith.mulf %15, %17 : vector<4x256xf32>
    %c255_i32 = arith.constant 255 : i32
    %19 = tpu.dynamic_rotate %1 by %c255_i32 dim 1 : vector<4x256xf32>, i32 -> vector<4x256xf32>
    %20 = vector.extract_strided_slice %2 {offsets = [4, 0], sizes = [1, 256], strides = [1, 1]} : vector<8x256xf32> to vector<1x256xf32>
    %21 = vector.broadcast %20 : vector<1x256xf32> to vector<4x256xf32>
    %22 = arith.mulf %19, %21 : vector<4x256xf32>
    %c241_i32 = arith.constant 241 : i32
    %23 = tpu.dynamic_rotate %1 by %c241_i32 dim 1 : vector<4x256xf32>, i32 -> vector<4x256xf32>
    %24 = vector.extract_strided_slice %2 {offsets = [5, 0], sizes = [1, 256], strides = [1, 1]} : vector<8x256xf32> to vector<1x256xf32>
    %25 = vector.broadcast %24 : vector<1x256xf32> to vector<4x256xf32>
    %26 = arith.mulf %23, %25 : vector<4x256xf32>
    %c240_i32 = arith.constant 240 : i32
    %27 = tpu.dynamic_rotate %1 by %c240_i32 dim 1 : vector<4x256xf32>, i32 -> vector<4x256xf32>
    %28 = vector.extract_strided_slice %2 {offsets = [6, 0], sizes = [1, 256], strides = [1, 1]} : vector<8x256xf32> to vector<1x256xf32>
    %29 = vector.broadcast %28 : vector<1x256xf32> to vector<4x256xf32>
    %30 = arith.mulf %27, %29 : vector<4x256xf32>
    %c239_i32 = arith.constant 239 : i32
    %31 = tpu.dynamic_rotate %1 by %c239_i32 dim 1 : vector<4x256xf32>, i32 -> vector<4x256xf32>
    %32 = vector.extract_strided_slice %2 {offsets = [7, 0], sizes = [1, 256], strides = [1, 1]} : vector<8x256xf32> to vector<1x256xf32>
    %33 = vector.broadcast %32 : vector<1x256xf32> to vector<4x256xf32>
    %34 = arith.mulf %31, %33 : vector<4x256xf32>
    %35 = tpu.concatenate %6, %10, %14, %18, %1, %22, %26, %30, %34 in 0 : vector<4x256xf32>, vector<4x256xf32>, vector<4x256xf32>, vector<4x256xf32>, vector<4x256xf32>, vector<4x256xf32>, vector<4x256xf32>, vector<4x256xf32>, vector<4x256xf32> -> vector<36x256xf32>
    %c0_4 = arith.constant 0 : index
    %c0_5 = arith.constant 0 : index
    %36 = vector.load %arg3[%c0_4, %c0_5] : memref<8x36xf32, #tpu.memory_space<vmem>>, vector<8x36xf32>
    %cst = arith.constant dense<0.000000e+00> : vector<8x256xf32>
    %37 = tpu.matmul %36, %35, %cst {dimension_numbers = #tpu.dot_dimension_numbers<[1], [0], [0], [1], [0, 0, 1, 1], [], []>} : vector<8x36xf32>, vector<36x256xf32>, vector<8x256xf32> -> vector<8x256xf32>
    %c0_6 = arith.constant 0 : index
    %c0_7 = arith.constant 0 : index
    %38 = vector.load %arg4[%c0_6, %c0_7] : memref<8x1xf32, #tpu.memory_space<vmem>>, vector<8x1xf32>
    %39 = vector.broadcast %38 : vector<8x1xf32> to vector<8x256xf32>
    %40 = arith.mulf %37, %39 : vector<8x256xf32>
    %c0_8 = arith.constant 0 : index
    %c0_9 = arith.constant 0 : index
    %41 = vector.load %arg5[%c0_8, %c0_9] : memref<8x1xf32, #tpu.memory_space<vmem>>, vector<8x1xf32>
    %42 = vector.broadcast %41 : vector<8x1xf32> to vector<8x256xf32>
    %43 = arith.addf %40, %42 : vector<8x256xf32>
    %cst_10 = arith.constant 0.000000e+00 : f32
    %44 = vector.broadcast %cst_10 : f32 to vector<8x256xf32>
    %45 = arith.maximumf %43, %44 : vector<8x256xf32>
    %c17_i32_11 = arith.constant 17 : i32
    %46 = tpu.dynamic_rotate %45 by %c17_i32_11 dim 1 : vector<8x256xf32>, i32 -> vector<8x256xf32>
    %47 = vector.extract_strided_slice %2 {offsets = [0, 0], sizes = [1, 256], strides = [1, 1]} : vector<8x256xf32> to vector<1x256xf32>
    %48 = vector.broadcast %47 : vector<1x256xf32> to vector<8x256xf32>
    %49 = arith.mulf %46, %48 : vector<8x256xf32>
    %c16_i32_12 = arith.constant 16 : i32
    %50 = tpu.dynamic_rotate %45 by %c16_i32_12 dim 1 : vector<8x256xf32>, i32 -> vector<8x256xf32>
    %51 = vector.extract_strided_slice %2 {offsets = [1, 0], sizes = [1, 256], strides = [1, 1]} : vector<8x256xf32> to vector<1x256xf32>
    %52 = vector.broadcast %51 : vector<1x256xf32> to vector<8x256xf32>
    %53 = arith.mulf %50, %52 : vector<8x256xf32>
    %c15_i32_13 = arith.constant 15 : i32
    %54 = tpu.dynamic_rotate %45 by %c15_i32_13 dim 1 : vector<8x256xf32>, i32 -> vector<8x256xf32>
    %55 = vector.extract_strided_slice %2 {offsets = [2, 0], sizes = [1, 256], strides = [1, 1]} : vector<8x256xf32> to vector<1x256xf32>
    %56 = vector.broadcast %55 : vector<1x256xf32> to vector<8x256xf32>
    %57 = arith.mulf %54, %56 : vector<8x256xf32>
    %c1_i32_14 = arith.constant 1 : i32
    %58 = tpu.dynamic_rotate %45 by %c1_i32_14 dim 1 : vector<8x256xf32>, i32 -> vector<8x256xf32>
    %59 = vector.extract_strided_slice %2 {offsets = [3, 0], sizes = [1, 256], strides = [1, 1]} : vector<8x256xf32> to vector<1x256xf32>
    %60 = vector.broadcast %59 : vector<1x256xf32> to vector<8x256xf32>
    %61 = arith.mulf %58, %60 : vector<8x256xf32>
    %c255_i32_15 = arith.constant 255 : i32
    %62 = tpu.dynamic_rotate %45 by %c255_i32_15 dim 1 : vector<8x256xf32>, i32 -> vector<8x256xf32>
    %63 = vector.extract_strided_slice %2 {offsets = [4, 0], sizes = [1, 256], strides = [1, 1]} : vector<8x256xf32> to vector<1x256xf32>
    %64 = vector.broadcast %63 : vector<1x256xf32> to vector<8x256xf32>
    %65 = arith.mulf %62, %64 : vector<8x256xf32>
    %c241_i32_16 = arith.constant 241 : i32
    %66 = tpu.dynamic_rotate %45 by %c241_i32_16 dim 1 : vector<8x256xf32>, i32 -> vector<8x256xf32>
    %67 = vector.extract_strided_slice %2 {offsets = [5, 0], sizes = [1, 256], strides = [1, 1]} : vector<8x256xf32> to vector<1x256xf32>
    %68 = vector.broadcast %67 : vector<1x256xf32> to vector<8x256xf32>
    %69 = arith.mulf %66, %68 : vector<8x256xf32>
    %c240_i32_17 = arith.constant 240 : i32
    %70 = tpu.dynamic_rotate %45 by %c240_i32_17 dim 1 : vector<8x256xf32>, i32 -> vector<8x256xf32>
    %71 = vector.extract_strided_slice %2 {offsets = [6, 0], sizes = [1, 256], strides = [1, 1]} : vector<8x256xf32> to vector<1x256xf32>
    %72 = vector.broadcast %71 : vector<1x256xf32> to vector<8x256xf32>
    %73 = arith.mulf %70, %72 : vector<8x256xf32>
    %c239_i32_18 = arith.constant 239 : i32
    %74 = tpu.dynamic_rotate %45 by %c239_i32_18 dim 1 : vector<8x256xf32>, i32 -> vector<8x256xf32>
    %75 = vector.extract_strided_slice %2 {offsets = [7, 0], sizes = [1, 256], strides = [1, 1]} : vector<8x256xf32> to vector<1x256xf32>
    %76 = vector.broadcast %75 : vector<1x256xf32> to vector<8x256xf32>
    %77 = arith.mulf %74, %76 : vector<8x256xf32>
    %78 = tpu.concatenate %49, %53, %57, %61, %45, %65, %69, %73, %77 in 0 : vector<8x256xf32>, vector<8x256xf32>, vector<8x256xf32>, vector<8x256xf32>, vector<8x256xf32>, vector<8x256xf32>, vector<8x256xf32>, vector<8x256xf32>, vector<8x256xf32> -> vector<72x256xf32>
    %c0_19 = arith.constant 0 : index
    %c0_20 = arith.constant 0 : index
    %79 = vector.load %arg6[%c0_19, %c0_20] : memref<8x72xf32, #tpu.memory_space<vmem>>, vector<8x72xf32>
    %cst_21 = arith.constant dense<0.000000e+00> : vector<8x256xf32>
    %80 = tpu.matmul %79, %78, %cst_21 {dimension_numbers = #tpu.dot_dimension_numbers<[1], [0], [0], [1], [0, 0, 1, 1], [], []>} : vector<8x72xf32>, vector<72x256xf32>, vector<8x256xf32> -> vector<8x256xf32>
    %c0_22 = arith.constant 0 : index
    %c0_23 = arith.constant 0 : index
    %81 = vector.load %arg7[%c0_22, %c0_23] : memref<8x1xf32, #tpu.memory_space<vmem>>, vector<8x1xf32>
    %82 = vector.broadcast %81 : vector<8x1xf32> to vector<8x256xf32>
    %83 = arith.mulf %80, %82 : vector<8x256xf32>
    %c0_24 = arith.constant 0 : index
    %c0_25 = arith.constant 0 : index
    %84 = vector.load %arg8[%c0_24, %c0_25] : memref<8x1xf32, #tpu.memory_space<vmem>>, vector<8x1xf32>
    %85 = vector.broadcast %84 : vector<8x1xf32> to vector<8x256xf32>
    %86 = arith.addf %83, %85 : vector<8x256xf32>
    %c0_26 = arith.constant 0 : index
    %c0_27 = arith.constant 0 : index
    %87 = vector.load %arg9[%c0_26, %c0_27] : memref<8x4xf32, #tpu.memory_space<vmem>>, vector<8x4xf32>
    %cst_28 = arith.constant dense<0.000000e+00> : vector<8x256xf32>
    %88 = tpu.matmul %87, %1, %cst_28 {dimension_numbers = #tpu.dot_dimension_numbers<[1], [0], [0], [1], [0, 0, 1, 1], [], []>} : vector<8x4xf32>, vector<4x256xf32>, vector<8x256xf32> -> vector<8x256xf32>
    %c0_29 = arith.constant 0 : index
    %c0_30 = arith.constant 0 : index
    %89 = vector.load %arg10[%c0_29, %c0_30] : memref<8x1xf32, #tpu.memory_space<vmem>>, vector<8x1xf32>
    %90 = vector.broadcast %89 : vector<8x1xf32> to vector<8x256xf32>
    %91 = arith.mulf %88, %90 : vector<8x256xf32>
    %c0_31 = arith.constant 0 : index
    %c0_32 = arith.constant 0 : index
    %92 = vector.load %arg11[%c0_31, %c0_32] : memref<8x1xf32, #tpu.memory_space<vmem>>, vector<8x1xf32>
    %93 = vector.broadcast %92 : vector<8x1xf32> to vector<8x256xf32>
    %94 = arith.addf %91, %93 : vector<8x256xf32>
    %95 = arith.addf %86, %94 : vector<8x256xf32>
    %cst_33 = arith.constant 0.000000e+00 : f32
    %96 = vector.broadcast %cst_33 : f32 to vector<8x256xf32>
    %97 = arith.maximumf %95, %96 : vector<8x256xf32>
    %c0_34 = arith.constant 0 : index
    %c0_35 = arith.constant 0 : index
    %c0_36 = arith.constant 0 : index
    %98 = vector.load %arg12[%c0_34, %c0_35, %c0_36] : memref<1x8x256xf32, #tpu.memory_space<vmem>>, vector<1x8x256xf32>
    %99 = vector.shape_cast %98 : vector<1x8x256xf32> to vector<8x256xf32>
    %100 = vector.shape_cast %97 : vector<8x256xf32> to vector<1x8x256xf32>
    tpu.vector_store %arg12[%c0_34, %c0_35, %c0_36], %100 {strides = array<i32>} : memref<1x8x256xf32, #tpu.memory_space<vmem>>, vector<1x8x256xf32>,
    return
  }
  func.func @transform_0(%arg0: i32) -> (i32, i32, i32) {
    %c0_i32 = arith.constant 0 : i32
    %c0_i32_0 = arith.constant 0 : i32
    %c0_i32_1 = arith.constant 0 : i32
    return %arg0, %c0_i32, %c0_i32_0 : i32, i32, i32
  }
  func.func @transform_1(%arg0: i32) -> (i32, i32) {
    %c0_i32 = arith.constant 0 : i32
    %c0_i32_0 = arith.constant 0 : i32
    %c0_i32_1 = arith.constant 0 : i32
    return %c0_i32, %c0_i32_0 : i32, i32
  }
  func.func @transform_2(%arg0: i32) -> (i32, i32) {
    %c0_i32 = arith.constant 0 : i32
    %c0_i32_0 = arith.constant 0 : i32
    %c0_i32_1 = arith.constant 0 : i32
    return %c0_i32, %c0_i32_0 : i32, i32
  }
  func.func @transform_3(%arg0: i32) -> (i32, i32) {
    %c0_i32 = arith.constant 0 : i32
    %c0_i32_0 = arith.constant 0 : i32
    %c0_i32_1 = arith.constant 0 : i32
    return %c0_i32, %c0_i32_0 : i32, i32
  }
  func.func @transform_4(%arg0: i32) -> (i32, i32) {
    %c0_i32 = arith.constant 0 : i32
    %c0_i32_0 = arith.constant 0 : i32
    %c0_i32_1 = arith.constant 0 : i32
    return %c0_i32, %c0_i32_0 : i32, i32
  }
  func.func @transform_5(%arg0: i32) -> (i32, i32) {
    %c0_i32 = arith.constant 0 : i32
    %c0_i32_0 = arith.constant 0 : i32
    %c0_i32_1 = arith.constant 0 : i32
    return %c0_i32, %c0_i32_0 : i32, i32
  }
  func.func @transform_6(%arg0: i32) -> (i32, i32) {
    %c0_i32 = arith.constant 0 : i32
    %c0_i32_0 = arith.constant 0 : i32
    %c0_i32_1 = arith.constant 0 : i32
    return %c0_i32, %c0_i32_0 : i32, i32
  }
  func.func @transform_7(%arg0: i32) -> (i32, i32) {
    %c0_i32 = arith.constant 0 : i32
    %c0_i32_0 = arith.constant 0 : i32
    %c0_i32_1 = arith.constant 0 : i32
    return %c0_i32, %c0_i32_0 : i32, i32
  }
  func.func @transform_8(%arg0: i32) -> (i32, i32) {
    %c0_i32 = arith.constant 0 : i32
    %c0_i32_0 = arith.constant 0 : i32
    %c0_i32_1 = arith.constant 0 : i32
    return %c0_i32, %c0_i32_0 : i32, i32
  }
  func.func @transform_9(%arg0: i32) -> (i32, i32) {
    %c0_i32 = arith.constant 0 : i32
    %c0_i32_0 = arith.constant 0 : i32
    %c0_i32_1 = arith.constant 0 : i32
    return %c0_i32, %c0_i32_0 : i32, i32
  }
  func.func @transform_10(%arg0: i32) -> (i32, i32) {
    %c0_i32 = arith.constant 0 : i32
    %c0_i32_0 = arith.constant 0 : i32
    %c0_i32_1 = arith.constant 0 : i32
    return %c0_i32, %c0_i32_0 : i32, i32
  }
  func.func @transform_11(%arg0: i32) -> (i32, i32, i32) {
    %c0_i32 = arith.constant 0 : i32
    %c0_i32_0 = arith.constant 0 : i32
    %c0_i32_1 = arith.constant 0 : i32
    return %arg0, %c0_i32, %c0_i32_0 : i32, i32, i32
  }
}

</mosaic_0001>

<llo_original>
// kernel: tpu_custom_call.1
$region0: #{tpu_custom_call.1}
  #allocation0 [shape = 'u32[]', space=smem, size = 0x4, offset = 0x4, fixed_abs, tag = 'smem constant byte address 0x4 - core index']
  #allocation1 [shape = 'u32[144,128]{1,0:T(1,128)}', space=vmem, size = 0x12000, scoped, tag = 'internal scratch']
  %s0 = inlined_call_operand.vmem [shape: f32[2,4,256], index: 0, kind: input, shape index: {}]
  %s1 = inlined_call_operand.vmem [shape: f32[8,256], index: 1, kind: input, shape index: {}]
  %s2 = inlined_call_operand.vmem [shape: f32[8,36], index: 2, kind: input, shape index: {}]
  %s3 = inlined_call_operand.vmem [shape: f32[8,1], index: 3, kind: input, shape index: {}]
  %s4 = inlined_call_operand.vmem [shape: f32[8,1], index: 4, kind: input, shape index: {}]
  %s5 = inlined_call_operand.vmem [shape: f32[8,72], index: 5, kind: input, shape index: {}]
  %s6 = inlined_call_operand.vmem [shape: f32[8,1], index: 6, kind: input, shape index: {}]
  %s7 = inlined_call_operand.vmem [shape: f32[8,1], index: 7, kind: input, shape index: {}]
  %s8 = inlined_call_operand.vmem [shape: f32[8,4], index: 8, kind: input, shape index: {}]
  %s9 = inlined_call_operand.vmem [shape: f32[8,1], index: 9, kind: input, shape index: {}]
  %s10 = inlined_call_operand.vmem [shape: f32[8,1], index: 10, kind: input, shape index: {}]
  %s11 = inlined_call_operand.hbm [shape: f32[2,8,256], index: 11, kind: output, shape index: {}]
  %s12 = sld [smem:[#allocation0]]
  $region77: #{tpu_custom_call.1} parent=0
    _
  %s14 = ssub.s32 1, %s12
  %s15 = scalar_select 0, %s14, %s12
  $region1: #{tpu_custom_call.1} parent=0
    #allocation2 [shape = 'u8[16384]{0}', space=vmem, size = 0x4000, scoped, tag = 'output window, operand 0']
    #allocation3 [shape = 's32[2]{0}', space=sflag, size = 0x8, scoped, tag = 'scoped memory for tpu_custom_call.1']
    %16 = vsyncpa [#allocation3], 0
    %s17 = scalar_lea.sflag [#allocation3], 1
    %18 = vsyncpa %s17, 0
    loop: start=0, step=1, limit=4
    $region2: #{tpu_custom_call.1} parent=1 // loop_pre_header
      _
    $region3: #{tpu_custom_call.1} parent=1 // loop_header
      %s20 = sphi 0, %s24
      %p21 = scmp.ge.s32.totalorder %s20, 4
      %s30 = sphi 0, %s32
      %s33 = sphi 0, %s30
      %s34 = sphi 0, %s33
      %s50 = sphi 0, %s34
      %s54 = sphi 0, %s54
      %s56 = sphi 0, %s54
      %s57 = sphi 0, %s56
      %s71 = sphi 0, %s57
      %s75 = sphi 0, %s75
      %s77 = sphi 0, %s75
      %s78 = sphi 0, %s77
      %s92 = sphi 0, %s78
      %s96 = sphi 0, %s96
      %s98 = sphi 0, %s96
      %s99 = sphi 0, %s98
      %s113 = sphi 0, %s99
      %s117 = sphi 0, %s117
      %s119 = sphi 0, %s117
      %s120 = sphi 0, %s119
      %s134 = sphi 0, %s120
      %s138 = sphi 0, %s138
      %s140 = sphi 0, %s138
      %s141 = sphi 0, %s140
      %s155 = sphi 0, %s141
      %s159 = sphi 0, %s159
      %s161 = sphi 0, %s159
      %s162 = sphi 0, %s161
      %s176 = sphi 0, %s162
      %s180 = sphi 0, %s180
      %s182 = sphi 0, %s180
      %s183 = sphi 0, %s182
      %s197 = sphi 0, %s183
      %s201 = sphi 0, %s201
      %s203 = sphi 0, %s201
      %s204 = sphi 0, %s203
      %s218 = sphi 0, %s204
      %s222 = sphi 0, %s222
      %s224 = sphi 0, %s222
      %s225 = sphi 0, %s224
      %s239 = sphi 0, %s225
      %s243 = sphi 0, %s243
      %s245 = sphi 0, %s243
      %s246 = sphi 0, %s245
      %s260 = sphi 0, %s246
      %s266 = sphi 0, %s268
      %s269 = sphi 0, %s266
      %s270 = sphi 0, %s269
      %s286 = sphi 0, %s270
    $region4: #{tpu_custom_call.1} parent=1 // loop_header_branch
      %23 = sbr.rel (%p21) target = $region8
    $region5: #{tpu_custom_call.1} parent=1 // loop_body
      %s25 = ssub.s32 %s20, 1
      %s26 = ssub.s32 %s20, 2
      %s27 = sadd.s32 %s20, 1
      %s28 = ssub.s32 %s20, %s27
      %p29 = scmp.eq.s32.totalorder %s28, 0
      %s31 = sadd.s32 %s30, 1
      %s32 = scalar_select %p29, %s30, %s31
      %p35 = pneg %p29
      %p36 = scmp.eq.s32.totalorder %s20, 1
      %p37 = por %p35, %p36
      %p38 = scmp.ne.s32.totalorder %s30, %s33
      %p39 = scmp.eq.s32.totalorder %s20, 0
      %p40 = por %p38, %p39
      %p41 = scmp.ne.s32.totalorder %s30, %s33
      %p42 = scmp.eq.s32.totalorder %s25, 1
      %p43 = por %p41, %p42
      %p44 = scmp.ne.s32.totalorder %s33, %s34
      %p45 = scmp.eq.s32.totalorder %s25, 0
      %p46 = por %p44, %p45
      %p47 = scmp.ne.s32.totalorder %s33, %s34
      %p48 = scmp.eq.s32.totalorder %s26, 1
      %p49 = por %p47, %p48
      %p51 = scmp.ne.s32.totalorder %s34, %s50
      %p52 = scmp.eq.s32.totalorder %s26, 0
      %p53 = por %p51, %p52
      %s55 = sadd.s32 %s54, 1
      %p58 = scmp.eq.s32.totalorder %s20, 1
      %p59 = scmp.ne.s32.totalorder %s54, %s56
      %p60 = scmp.eq.s32.totalorder %s20, 0
      %p61 = por %p59, %p60
      %p62 = scmp.ne.s32.totalorder %s54, %s56
      %p63 = scmp.eq.s32.totalorder %s25, 1
      %p64 = por %p62, %p63
      %p65 = scmp.ne.s32.totalorder %s56, %s57
      %p66 = scmp.eq.s32.totalorder %s25, 0
      %p67 = por %p65, %p66
      %p68 = scmp.ne.s32.totalorder %s56, %s57
      %p69 = scmp.eq.s32.totalorder %s26, 1
      %p70 = por %p68, %p69
      %p72 = scmp.ne.s32.totalorder %s57, %s71
      %p73 = scmp.eq.s32.totalorder %s26, 0
      %p74 = por %p72, %p73
      %s76 = sadd.s32 %s75, 1
      %p79 = scmp.eq.s32.totalorder %s20, 1
      %p80 = scmp.ne.s32.totalorder %s75, %s77
      %p81 = scmp.eq.s32.totalorder %s20, 0
      %p82 = por %p80, %p81
      %p83 = scmp.ne.s32.totalorder %s75, %s77
      %p84 = scmp.eq.s32.totalorder %s25, 1
      %p85 = por %p83, %p84
      %p86 = scmp.ne.s32.totalorder %s77, %s78
      %p87 = scmp.eq.s32.totalorder %s25, 0
      %p88 = por %p86, %p87
      %p89 = scmp.ne.s32.totalorder %s77, %s78
      %p90 = scmp.eq.s32.totalorder %s26, 1
      %p91 = por %p89, %p90
      %p93 = scmp.ne.s32.totalorder %s78, %s92
      %p94 = scmp.eq.s32.totalorder %s26, 0
      %p95 = por %p93, %p94
      %s97 = sadd.s32 %s96, 1
      %p100 = scmp.eq.s32.totalorder %s20, 1
      %p101 = scmp.ne.s32.totalorder %s96, %s98
      %p102 = scmp.eq.s32.totalorder %s20, 0
      %p103 = por %p101, %p102
      %p104 = scmp.ne.s32.totalorder %s96, %s98
      %p105 = scmp.eq.s32.totalorder %s25, 1
      %p106 = por %p104, %p105
      %p107 = scmp.ne.s32.totalorder %s98, %s99
      %p108 = scmp.eq.s32.totalorder %s25, 0
      %p109 = por %p107, %p108
      %p110 = scmp.ne.s32.totalorder %s98, %s99
      %p111 = scmp.eq.s32.totalorder %s26, 1
      %p112 = por %p110, %p111
      %p114 = scmp.ne.s32.totalorder %s99, %s113
      %p115 = scmp.eq.s32.totalorder %s26, 0
      %p116 = por %p114, %p115
      %s118 = sadd.s32 %s117, 1
      %p121 = scmp.eq.s32.totalorder %s20, 1
      %p122 = scmp.ne.s32.totalorder %s117, %s119
      %p123 = scmp.eq.s32.totalorder %s20, 0
      %p124 = por %p122, %p123
      %p125 = scmp.ne.s32.totalorder %s117, %s119
      %p126 = scmp.eq.s32.totalorder %s25, 1
      %p127 = por %p125, %p126
      %p128 = scmp.ne.s32.totalorder %s119, %s120
      %p129 = scmp.eq.s32.totalorder %s25, 0
      %p130 = por %p128, %p129
      %p131 = scmp.ne.s32.totalorder %s119, %s120
      %p132 = scmp.eq.s32.totalorder %s26, 1
      %p133 = por %p131, %p132
      %p135 = scmp.ne.s32.totalorder %s120, %s134
      %p136 = scmp.eq.s32.totalorder %s26, 0
      %p137 = por %p135, %p136
      %s139 = sadd.s32 %s138, 1
      %p142 = scmp.eq.s32.totalorder %s20, 1
      %p143 = scmp.ne.s32.totalorder %s138, %s140
      %p144 = scmp.eq.s32.totalorder %s20, 0
      %p145 = por %p143, %p144
      %p146 = scmp.ne.s32.totalorder %s138, %s140
      %p147 = scmp.eq.s32.totalorder %s25, 1
      %p148 = por %p146, %p147
      %p149 = scmp.ne.s32.totalorder %s140, %s141
      %p150 = scmp.eq.s32.totalorder %s25, 0
      %p151 = por %p149, %p150
      %p152 = scmp.ne.s32.totalorder %s140, %s141
      %p153 = scmp.eq.s32.totalorder %s26, 1
      %p154 = por %p152, %p153
      %p156 = scmp.ne.s32.totalorder %s141, %s155
      %p157 = scmp.eq.s32.totalorder %s26, 0
      %p158 = por %p156, %p157
      %s160 = sadd.s32 %s159, 1
      %p163 = scmp.eq.s32.totalorder %s20, 1
      %p164 = scmp.ne.s32.totalorder %s159, %s161
      %p165 = scmp.eq.s32.totalorder %s20, 0
      %p166 = por %p164, %p165
      %p167 = scmp.ne.s32.totalorder %s159, %s161
      %p168 = scmp.eq.s32.totalorder %s25, 1
      %p169 = por %p167, %p168
      %p170 = scmp.ne.s32.totalorder %s161, %s162
      %p171 = scmp.eq.s32.totalorder %s25, 0
      %p172 = por %p170, %p171
      %p173 = scmp.ne.s32.totalorder %s161, %s162
      %p174 = scmp.eq.s32.totalorder %s26, 1
      %p175 = por %p173, %p174
      %p177 = scmp.ne.s32.totalorder %s162, %s176
      %p178 = scmp.eq.s32.totalorder %s26, 0
      %p179 = por %p177, %p178
      %s181 = sadd.s32 %s180, 1
      %p184 = scmp.eq.s32.totalorder %s20, 1
      %p185 = scmp.ne.s32.totalorder %s180, %s182
      %p186 = scmp.eq.s32.totalorder %s20, 0
      %p187 = por %p185, %p186
      %p188 = scmp.ne.s32.totalorder %s180, %s182
      %p189 = scmp.eq.s32.totalorder %s25, 1
      %p190 = por %p188, %p189
      %p191 = scmp.ne.s32.totalorder %s182, %s183
      %p192 = scmp.eq.s32.totalorder %s25, 0
      %p193 = por %p191, %p192
      %p194 = scmp.ne.s32.totalorder %s182, %s183
      %p195 = scmp.eq.s32.totalorder %s26, 1
      %p196 = por %p194, %p195
      %p198 = scmp.ne.s32.totalorder %s183, %s197
      %p199 = scmp.eq.s32.totalorder %s26, 0
      %p200 = por %p198, %p199
      %s202 = sadd.s32 %s201, 1
      %p205 = scmp.eq.s32.totalorder %s20, 1
      %p206 = scmp.ne.s32.totalorder %s201, %s203
      %p207 = scmp.eq.s32.totalorder %s20, 0
      %p208 = por %p206, %p207
      %p209 = scmp.ne.s32.totalorder %s201, %s203
      %p210 = scmp.eq.s32.totalorder %s25, 1
      %p211 = por %p209, %p210
      %p212 = scmp.ne.s32.totalorder %s203, %s204
      %p213 = scmp.eq.s32.totalorder %s25, 0
      %p214 = por %p212, %p213
      %p215 = scmp.ne.s32.totalorder %s203, %s204
      %p216 = scmp.eq.s32.totalorder %s26, 1
      %p217 = por %p215, %p216
      %p219 = scmp.ne.s32.totalorder %s204, %s218
      %p220 = scmp.eq.s32.totalorder %s26, 0
      %p221 = por %p219, %p220
      %s223 = sadd.s32 %s222, 1
      %p226 = scmp.eq.s32.totalorder %s20, 1
      %p227 = scmp.ne.s32.totalorder %s222, %s224
      %p228 = scmp.eq.s32.totalorder %s20, 0
      %p229 = por %p227, %p228
      %p230 = scmp.ne.s32.totalorder %s222, %s224
      %p231 = scmp.eq.s32.totalorder %s25, 1
      %p232 = por %p230, %p231
      %p233 = scmp.ne.s32.totalorder %s224, %s225
      %p234 = scmp.eq.s32.totalorder %s25, 0
      %p235 = por %p233, %p234
      %p236 = scmp.ne.s32.totalorder %s224, %s225
      %p237 = scmp.eq.s32.totalorder %s26, 1
      %p238 = por %p236, %p237
      %p240 = scmp.ne.s32.totalorder %s225, %s239
      %p241 = scmp.eq.s32.totalorder %s26, 0
      %p242 = por %p240, %p241
      %s244 = sadd.s32 %s243, 1
      %p247 = scmp.eq.s32.totalorder %s20, 1
      %p248 = scmp.ne.s32.totalorder %s243, %s245
      %p249 = scmp.eq.s32.totalorder %s20, 0
      %p250 = por %p248, %p249
      %p251 = scmp.ne.s32.totalorder %s243, %s245
      %p252 = scmp.eq.s32.totalorder %s25, 1
      %p253 = por %p251, %p252
      %p254 = scmp.ne.s32.totalorder %s245, %s246
      %p255 = scmp.eq.s32.totalorder %s25, 0
      %p256 = por %p254, %p255
      %p257 = scmp.ne.s32.totalorder %s245, %s246
      %p258 = scmp.eq.s32.totalorder %s26, 1
      %p259 = por %p257, %p258
      %p261 = scmp.ne.s32.totalorder %s246, %s260
      %p262 = scmp.eq.s32.totalorder %s26, 0
      %p263 = por %p261, %p262
      %s264 = ssub.s32 %s20, %s27
      %p265 = scmp.eq.s32.totalorder %s264, 0
      %s267 = sadd.s32 %s266, 1
      %s268 = scalar_select %p265, %s266, %s267
      %p271 = pneg %p265
      %p272 = scmp.eq.s32.totalorder %s20, 1
      %p273 = por %p271, %p272
      %p274 = scmp.ne.s32.totalorder %s266, %s269
      %p275 = scmp.eq.s32.totalorder %s20, 0
      %p276 = por %p274, %p275
      %p277 = scmp.ne.s32.totalorder %s266, %s269
      %p278 = scmp.eq.s32.totalorder %s25, 1
      %p279 = por %p277, %p278
      %p280 = scmp.ne.s32.totalorder %s269, %s270
      %p281 = scmp.eq.s32.totalorder %s25, 0
      %p282 = por %p280, %p281
      %p283 = scmp.ne.s32.totalorder %s269, %s270
      %p284 = scmp.eq.s32.totalorder %s26, 1
      %p285 = por %p283, %p284
      %p287 = scmp.ne.s32.totalorder %s270, %s286
      %p288 = scmp.eq.s32.totalorder %s26, 0
      %p289 = por %p287, %p288
      %p290 = scmp.le.s32.totalorder 1, %s20
      %p291 = scmp.lt.s32.totalorder %s20, 3
      %p292 = pnand %p290, %p291
      %p293 = pneg %p292
      // Predicated region
      $region9: #{tpu_custom_call.1} parent=5 // pred_check
        _
      $region10: #{tpu_custom_call.1} parent=5 // pred_check_branch
        %295 = sbr.rel (%p292) target = $region12
      $region11: #{tpu_custom_call.1} parent=5 // pred_region
        %s296 = ssub.s32 %s20, 1
        // Predicated region
        $region13: #{tpu_custom_call.1} parent=11 // pred_check
          %p297 = pneg %p67
        $region14: #{tpu_custom_call.1} parent=11 // pred_check_branch
          %299 = sbr.rel (%p297) target = $region16
        $region15: #{tpu_custom_call.1} parent=11 // pred_region
          _
        $region16: #{tpu_custom_call.1} parent=11 // pred_fallthru
          _
        // Predicated region
        $region17: #{tpu_custom_call.1} parent=11 // pred_check
          %p300 = pneg %p88
        $region18: #{tpu_custom_call.1} parent=11 // pred_check_branch
          %302 = sbr.rel (%p300) target = $region20
        $region19: #{tpu_custom_call.1} parent=11 // pred_region
          _
        $region20: #{tpu_custom_call.1} parent=11 // pred_fallthru
          _
        // Predicated region
        $region21: #{tpu_custom_call.1} parent=11 // pred_check
          %p303 = pneg %p109
        $region22: #{tpu_custom_call.1} parent=11 // pred_check_branch
          %305 = sbr.rel (%p303) target = $region24
        $region23: #{tpu_custom_call.1} parent=11 // pred_region
          _
        $region24: #{tpu_custom_call.1} parent=11 // pred_fallthru
          _
        // Predicated region
        $region25: #{tpu_custom_call.1} parent=11 // pred_check
          %p306 = pneg %p130
        $region26: #{tpu_custom_call.1} parent=11 // pred_check_branch
          %308 = sbr.rel (%p306) target = $region28
        $region27: #{tpu_custom_call.1} parent=11 // pred_region
          _
        $region28: #{tpu_custom_call.1} parent=11 // pred_fallthru
          _
        // Predicated region
        $region29: #{tpu_custom_call.1} parent=11 // pred_check
          %p309 = pneg %p151
        $region30: #{tpu_custom_call.1} parent=11 // pred_check_branch
          %311 = sbr.rel (%p309) target = $region32
        $region31: #{tpu_custom_call.1} parent=11 // pred_region
          _
        $region32: #{tpu_custom_call.1} parent=11 // pred_fallthru
          _
        // Predicated region
        $region33: #{tpu_custom_call.1} parent=11 // pred_check
          %p312 = pneg %p172
        $region34: #{tpu_custom_call.1} parent=11 // pred_check_branch
          %314 = sbr.rel (%p312) target = $region36
        $region35: #{tpu_custom_call.1} parent=11 // pred_region
          _
        $region36: #{tpu_custom_call.1} parent=11 // pred_fallthru
          _
        // Predicated region
        $region37: #{tpu_custom_call.1} parent=11 // pred_check
          %p315 = pneg %p193
        $region38: #{tpu_custom_call.1} parent=11 // pred_check_branch
          %317 = sbr.rel (%p315) target = $region40
        $region39: #{tpu_custom_call.1} parent=11 // pred_region
          _
        $region40: #{tpu_custom_call.1} parent=11 // pred_fallthru
          _
        // Predicated region
        $region41: #{tpu_custom_call.1} parent=11 // pred_check
          %p318 = pneg %p214
        $region42: #{tpu_custom_call.1} parent=11 // pred_check_branch
          %320 = sbr.rel (%p318) target = $region44
        $region43: #{tpu_custom_call.1} parent=11 // pred_region
          _
        $region44: #{tpu_custom_call.1} parent=11 // pred_fallthru
          _
        // Predicated region
        $region45: #{tpu_custom_call.1} parent=11 // pred_check
          %p321 = pneg %p235
        $region46: #{tpu_custom_call.1} parent=11 // pred_check_branch
          %323 = sbr.rel (%p321) target = $region48
        $region47: #{tpu_custom_call.1} parent=11 // pred_region
          _
        $region48: #{tpu_custom_call.1} parent=11 // pred_fallthru
          _
        // Predicated region
        $region49: #{tpu_custom_call.1} parent=11 // pred_check
          %p324 = pneg %p256
        $region50: #{tpu_custom_call.1} parent=11 // pred_check_branch
          %326 = sbr.rel (%p324) target = $region52
        $region51: #{tpu_custom_call.1} parent=11 // pred_region
          _
        $region52: #{tpu_custom_call.1} parent=11 // pred_fallthru
          _
      $region12: #{tpu_custom_call.1} parent=5 // pred_fallthru
        _
      %p327 = scmp.lt.s32.totalorder %s20, 2
      // Predicated region
      $region53: #{tpu_custom_call.1} parent=5 // pred_check
        %p328 = pneg %p327
      $region54: #{tpu_custom_call.1} parent=5 // pred_check_branch
        %330 = sbr.rel (%p328) target = $region56
      $region55: #{tpu_custom_call.1} parent=5 // pred_region
        // Predicated region
        $region57: #{tpu_custom_call.1} parent=55 // pred_check
          %p331 = pneg %p40
        $region58: #{tpu_custom_call.1} parent=55 // pred_check_branch
          %333 = sbr.rel (%p331) target = $region60
        $region59: #{tpu_custom_call.1} parent=55 // pred_region
          %p334 = scmp.lt.s32.totalorder %s20, 1
          %s335 = scalar_select %p334, %s20, 1
          %s336 = smul.addr %s335, 2
          %s337 = smul.addr %s336, 4
          %s338 = scalar_lea.vmem %s0, %s337
        $region60: #{tpu_custom_call.1} parent=55 // pred_fallthru
          _
      $region56: #{tpu_custom_call.1} parent=5 // pred_fallthru
        _
      %p339 = scmp.le.s32.totalorder 1, %s20
      %p340 = scmp.lt.s32.totalorder %s20, 3
      %p341 = pnand %p339, %p340
      %p342 = pneg %p341
      // Predicated region
      $region61: #{tpu_custom_call.1} parent=5 // pred_check
        _
      $region62: #{tpu_custom_call.1} parent=5 // pred_check_branch
        %344 = sbr.rel (%p341) target = $region64
      $region63: #{tpu_custom_call.1} parent=5 // pred_region
        %s345 = ssub.s32 %s20, 1
        %p346 = scmp.lt.s32.totalorder %s25, 1
        %s347 = scalar_select %p346, %s25, 1
        %s348 = smul.addr %s347, 2
        %s349 = smul.addr %s348, 4
        %s350 = scalar_lea.vmem %s0, %s349
        %p351 = pneg %p46
        %p352 = pneg %p43
        %p353 = pneg %p67
        %p354 = pneg %p64
        %p355 = pneg %p88
        %p356 = pneg %p85
        %p357 = pneg %p109
        %p358 = pneg %p106
        %p359 = pneg %p130
        %p360 = pneg %p127
        %p361 = pneg %p151
        %p362 = pneg %p148
        %p363 = pneg %p172
        %p364 = pneg %p169
        %p365 = pneg %p193
        %p366 = pneg %p190
        %p367 = pneg %p214
        %p368 = pneg %p211
        %p369 = pneg %p235
        %p370 = pneg %p232
        %p371 = pneg %p256
        %p372 = pneg %p253
        %p373 = pneg %p282
        %p374 = pneg %p279
        %s375 = sand.u32 %s269, 1
        %s376 = scalar_lea.sflag [#allocation3], %s375
        %s377 = sand.u32 %s269, 1
        %s378 = smul.addr %s377, 16
        %s379 = scalar_lea.vmem [#allocation2], %s378
        %p380 = scmp.lt.s32.totalorder %s25, 1
        %s381 = scalar_select %p380, %s25, 1
        %s382 = smul.addr %s381, 2
        %s383 = smul.addr %s382, 4
        %s384 = scalar_lea.vmem %s0, %s383
        %v385 = vld [vmem:[%s384] sm:$0xff]
        %v386 = vld [vmem:[%s1] sm:$0xff]
        %v387 = vld [vmem:[%s1 + $0x8] sm:$0xff]
        %v389 = vcombine.high %v385, %v385
        %391 = vrot.lane.b32.xlu0 %v385, 17
        %v392 = vpop.permute.xlu0 %391
        %393 = vrot.lane.b32.xlu0 %v389, 17
        %v394 = vpop.permute.xlu0 %393
        %v395 = vlaneseq
        %v396 = vand.u32 %v395, 127
        %vm397 = vcmp.lt.s32.totalorder %v396, 17
        %v398 = vsel %vm397, %v392, %v394
        %v399 = vsel %vm397, %v394, %v392
        %v400 = vlaneseq
        %v401 = vshrl.u32 %v400, 7
        %v402 = vsub.s32 0, %v401
        %v403 = vrot.slane %v386, %v402
        %v404 = vlaneseq
        %v405 = vshrl.u32 %v404, 7
        %v406 = vsub.s32 0, %v405
        %v407 = vrot.slane %v387, %v406
        %v408 = vmul.f32 %v399, %v403
        %v409 = vmul.f32 %v398, %v407
        %410 = vrot.lane.b32.xlu0 %v385, 16
        %v411 = vpop.permute.xlu0 %410
        %412 = vrot.lane.b32.xlu0 %v389, 16
        %v413 = vpop.permute.xlu0 %412
        %vm414 = vcmp.lt.s32.totalorder %v396, 16
        %v415 = vsel %vm414, %v411, %v413
        %v416 = vsel %vm414, %v413, %v411
        %v417 = vlaneseq
        %v418 = vshrl.u32 %v417, 7
        %v419 = vsub.s32 1, %v418
        %v420 = vrot.slane %v386, %v419
        %v421 = vlaneseq
        %v422 = vshrl.u32 %v421, 7
        %v423 = vsub.s32 1, %v422
        %v424 = vrot.slane %v387, %v423
        %v425 = vmul.f32 %v416, %v420
        %v426 = vmul.f32 %v415, %v424
        %427 = vrot.lane.b32.xlu0 %v385, 15
        %v428 = vpop.permute.xlu0 %427
        %429 = vrot.lane.b32.xlu0 %v389, 15
        %v430 = vpop.permute.xlu0 %429
        %vm431 = vcmp.lt.s32.totalorder %v396, 15
        %v432 = vsel %vm431, %v428, %v430
        %v433 = vsel %vm431, %v430, %v428
        %v434 = vlaneseq
        %v435 = vshrl.u32 %v434, 7
        %v436 = vsub.s32 2, %v435
        %v437 = vrot.slane %v386, %v436
        %v438 = vlaneseq
        %v439 = vshrl.u32 %v438, 7
        %v440 = vsub.s32 2, %v439
        %v441 = vrot.slane %v387, %v440
        %v442 = vmul.f32 %v433, %v437
        %v443 = vmul.f32 %v432, %v441
        %444 = vrot.lane.b32.xlu0 %v385, 1
        %v445 = vpop.permute.xlu0 %444
        %446 = vrot.lane.b32.xlu0 %v389, 1
        %v447 = vpop.permute.xlu0 %446
        %vm448 = vcmp.lt.s32.totalorder %v396, 1
        %v449 = vsel %vm448, %v445, %v447
        %v450 = vsel %vm448, %v447, %v445
        %v451 = vlaneseq
        %v452 = vshrl.u32 %v451, 7
        %v453 = vsub.s32 3, %v452
        %v454 = vrot.slane %v386, %v453
        %v455 = vlaneseq
        %v456 = vshrl.u32 %v455, 7
        %v457 = vsub.s32 3, %v456
        %v458 = vrot.slane %v387, %v457
        %v459 = vmul.f32 %v450, %v454
        %v460 = vmul.f32 %v449, %v458
        %461 = vrot.lane.b32.xlu0 %v385, 127
        %v462 = vpop.permute.xlu0 %461
        %463 = vrot.lane.b32.xlu0 %v389, 127
        %v464 = vpop.permute.xlu0 %463
        %vm465 = vcmp.lt.s32.totalorder %v396, 127
        %v466 = vsel %vm465, %v462, %v464
        %v467 = vsel %vm465, %v464, %v462
        %v468 = vlaneseq
        %v469 = vshrl.u32 %v468, 7
        %v470 = vsub.s32 4, %v469
        %v471 = vrot.slane %v386, %v470
        %v472 = vlaneseq
        %v473 = vshrl.u32 %v472, 7
        %v474 = vsub.s32 4, %v473
        %v475 = vrot.slane %v387, %v474
        %v476 = vmul.f32 %v466, %v471
        %v477 = vmul.f32 %v467, %v475
        %478 = vrot.lane.b32.xlu0 %v385, 113
        %v479 = vpop.permute.xlu0 %478
        %480 = vrot.lane.b32.xlu0 %v389, 113
        %v481 = vpop.permute.xlu0 %480
        %vm482 = vcmp.lt.s32.totalorder %v396, 113
        %v483 = vsel %vm482, %v479, %v481
        %v484 = vsel %vm482, %v481, %v479
        %v485 = vlaneseq
        %v486 = vshrl.u32 %v485, 7
        %v487 = vsub.s32 5, %v486
        %v488 = vrot.slane %v386, %v487
        %v489 = vlaneseq
        %v490 = vshrl.u32 %v489, 7
        %v491 = vsub.s32 5, %v490
        %v492 = vrot.slane %v387, %v491
        %v493 = vmul.f32 %v483, %v488
        %v494 = vmul.f32 %v484, %v492
        %495 = vrot.lane.b32.xlu0 %v385, 112
        %v496 = vpop.permute.xlu0 %495
        %497 = vrot.lane.b32.xlu0 %v389, 112
        %v498 = vpop.permute.xlu0 %497
        %vm499 = vcmp.lt.s32.totalorder %v396, 112
        %v500 = vsel %vm499, %v496, %v498
        %v501 = vsel %vm499, %v498, %v496
        %v502 = vlaneseq
        %v503 = vshrl.u32 %v502, 7
        %v504 = vsub.s32 6, %v503
        %v505 = vrot.slane %v386, %v504
        %v506 = vlaneseq
        %v507 = vshrl.u32 %v506, 7
        %v508 = vsub.s32 6, %v507
        %v509 = vrot.slane %v387, %v508
        %v510 = vmul.f32 %v500, %v505
        %v511 = vmul.f32 %v501, %v509
        %512 = vrot.lane.b32.xlu0 %v385, 111
        %v513 = vpop.permute.xlu0 %512
        %514 = vrot.lane.b32.xlu0 %v389, 111
        %v515 = vpop.permute.xlu0 %514
        %vm516 = vcmp.lt.s32.totalorder %v396, 111
        %v517 = vsel %vm516, %v513, %v515
        %v518 = vsel %vm516, %v515, %v513
        %v519 = vlaneseq
        %v520 = vshrl.u32 %v519, 7
        %v521 = vsub.s32 7, %v520
        %v522 = vrot.slane %v386, %v521
        %v523 = vlaneseq
        %v524 = vshrl.u32 %v523, 7
        %v525 = vsub.s32 7, %v524
        %v526 = vrot.slane %v387, %v525
        %v527 = vmul.f32 %v517, %v522
        %v528 = vmul.f32 %v518, %v526
        %v531 = vrot.slane %v425, 4
        %v532 = vrot.slane %v426, 4
        %v537 = vrot.slane %v459, 4
        %v538 = vrot.slane %v460, 4
        %v543 = vrot.slane %v476, 4
        %v544 = vrot.slane %v477, 4
        %v549 = vrot.slane %v510, 4
        %v550 = vrot.slane %v511, 4
        %vm553 = vcmask 1043456
        %v554 = vsel %vm553, %v408, %v531
        %v555 = vsel %vm553, %v409, %v532
        %v556 = vsel %vm553, %v442, %v537
        %v557 = vsel %vm553, %v443, %v538
        %v558 = vsel %vm553, %v385, %v543
        %v559 = vsel %vm553, %v389, %v544
        %v560 = vsel %vm553, %v493, %v549
        %v561 = vsel %vm553, %v494, %v550
        %v562 = vld [vmem:[%s2] sm:$0xff]
        %vm563 = vcmask 293888
        %v565 = vsel %vm563, %v562, 0
        %v568 = vsel %vm553, %v527, 0
        %v571 = vsel %vm553, %v528, 0
        %573 = vmatprep.subr.mxu0 0.0
        %574 = vmatpush1.msra.mxu0 0.0
        %575 = vmatprep.subr.mxu0 0.0
        %576 = vmatpush1.msra.mxu0 0.0
        %577 = vmatprep.subr.mxu0 0.0
        %578 = vmatpush1.msra.mxu0 0.0
        %579 = vmatprep.subr.mxu0 0.0
        %580 = vmatpush1.msra.mxu0 0.0
        %581 = vmatprep.subr.mxu0 0.0
        %582 = vmatpush1.msra.mxu0 0.0
        %583 = vmatprep.subr.mxu0 0.0
        %584 = vmatpush1.msra.mxu0 0.0
        %585 = vmatprep.subr.mxu0 0.0
        %586 = vmatpush1.msra.mxu0 0.0
        %587 = vmatprep.subr.mxu0 0.0
        %588 = vmatpush1.msra.mxu0 0.0
        %589 = vmatprep.subr.mxu0 0.0
        %590 = vmatpush1.msra.mxu0 0.0
        %591 = vmatprep.subr.mxu0 0.0
        %592 = vmatpush1.msra.mxu0 0.0
        %593 = vmatprep.subr.mxu0 0.0
        %594 = vmatpush1.msra.mxu0 0.0
        %595 = vmatprep.subr.mxu0 %v571
        %596 = vmatpush1.msra.mxu0 %v568
        %597 = vmatprep.subr.mxu0 %v561
        %598 = vmatpush1.msra.mxu0 %v560
        %599 = vmatprep.subr.mxu0 %v559
        %600 = vmatpush1.msra.mxu0 %v558
        %601 = vmatprep.subr.mxu0 %v557
        %602 = vmatpush1.msra.mxu0 %v556
        %603 = vmatprep.subr.mxu0 %v555
        %604 = vmatpush1.msra.mxu0 %v554
        %605 = vmatprep.subr.mxu0 0.0
        %606 = vmatpush2.msra.mxu0 0.0
        %607 = vmatprep.subr.mxu0 0.0
        %608 = vmatpush2.msra.mxu0 0.0
        %609 = vmatprep.subr.mxu0 0.0
        %610 = vmatpush2.msra.mxu0 0.0
        %611 = vmatprep.subr.mxu0 0.0
        %612 = vmatpush2.msra.mxu0 0.0
        %613 = vmatprep.subr.mxu0 0.0
        %614 = vmatpush2.msra.mxu0 0.0
        %615 = vmatprep.subr.mxu0 0.0
        %616 = vmatpush2.msra.mxu0 0.0
        %617 = vmatprep.subr.mxu0 0.0
        %618 = vmatpush2.msra.mxu0 0.0
        %619 = vmatprep.subr.mxu0 0.0
        %620 = vmatpush2.msra.mxu0 0.0
        %621 = vmatprep.subr.mxu0 0.0
        %622 = vmatpush2.msra.mxu0 0.0
        %623 = vmatprep.subr.mxu0 0.0
        %624 = vmatpush2.msra.mxu0 0.0
        %625 = vmatprep.subr.mxu0 0.0
        %626 = vmatpush2.msra.mxu0 0.0
        %627 = vmatprep.subr.mxu0 0.0
        %628 = vmatpush2.msra.mxu0 0.0
        %629 = vmatprep.subr.mxu0 0.0
        %630 = vmatpush2.msra.mxu0 0.0
        %631 = vmatprep.subr.mxu0 0.0
        %632 = vmatpush2.msra.mxu0 0.0
        %633 = vmatprep.subr.mxu0 0.0
        %634 = vmatpush2.msra.mxu0 0.0
        %635 = vmatprep.subr.mxu0 0.0
        %636 = vmatpush2.msra.mxu0 0.0
        %637 = vmatprep.mubr.f32.mxu0 0.0
        %638 = vmatmul.mubr.f32.gmra.mxu0 %v565
        %v639 = vpop.f32.mrf.mxu0
        %v640 = vadd.f32 0.0, %v639
        %v641 = vpop.f32.mrf.mxu0
        %v642 = vadd.f32 0.0, %v641
        %643 = vdwg.mxu0
        %v644 = vld [vmem:[%s3] sm:$0xff]
        %646 = vset.pattern.permute.xlu0 0
        %647 = vperm.xlu0 %646, %v644
        %v648 = vpop.permute.xlu0 %647
        %v650 = vmul.f32 %v640, %v648
        %v651 = vmul.f32 %v642, %v648
        %v652 = vld [vmem:[%s4] sm:$0xff]
        %654 = vset.pattern.permute.xlu0 0
        %655 = vperm.xlu0 %654, %v652
        %v656 = vpop.permute.xlu0 %655
        %v658 = vadd.f32 %v650, %v656
        %v659 = vadd.f32 %v651, %v656
        %v660 = vmax.f32 %v658, 0.0
        %v661 = vmax.f32 %v659, 0.0
        %662 = vrot.lane.b32.xlu0 %v660, 17
        %v663 = vpop.permute.xlu0 %662
        %664 = vrot.lane.b32.xlu0 %v661, 17
        %v665 = vpop.permute.xlu0 %664
        %v666 = vsel %vm397, %v663, %v665
        %v667 = vsel %vm397, %v665, %v663
        %v668 = vmul.f32 %v667, %v403
        %v669 = vmul.f32 %v666, %v407
        %670 = vrot.lane.b32.xlu0 %v660, 16
        %v671 = vpop.permute.xlu0 %670
        %672 = vrot.lane.b32.xlu0 %v661, 16
        %v673 = vpop.permute.xlu0 %672
        %v674 = vsel %vm414, %v671, %v673
        %v675 = vsel %vm414, %v673, %v671
        %v676 = vmul.f32 %v675, %v420
        %v677 = vmul.f32 %v674, %v424
        %678 = vrot.lane.b32.xlu0 %v660, 15
        %v679 = vpop.permute.xlu0 %678
        %680 = vrot.lane.b32.xlu0 %v661, 15
        %v681 = vpop.permute.xlu0 %680
        %v682 = vsel %vm431, %v679, %v681
        %v683 = vsel %vm431, %v681, %v679
        %v684 = vmul.f32 %v683, %v437
        %v685 = vmul.f32 %v682, %v441
        %686 = vrot.lane.b32.xlu0 %v660, 1
        %v687 = vpop.permute.xlu0 %686
        %688 = vrot.lane.b32.xlu0 %v661, 1
        %v689 = vpop.permute.xlu0 %688
        %v690 = vsel %vm448, %v687, %v689
        %v691 = vsel %vm448, %v689, %v687
        %v692 = vmul.f32 %v691, %v454
        %v693 = vmul.f32 %v690, %v458
        %694 = vrot.lane.b32.xlu0 %v660, 127
        %v695 = vpop.permute.xlu0 %694
        %696 = vrot.lane.b32.xlu0 %v661, 127
        %v697 = vpop.permute.xlu0 %696
        %v698 = vsel %vm465, %v695, %v697
        %v699 = vsel %vm465, %v697, %v695
        %v700 = vmul.f32 %v698, %v471
        %v701 = vmul.f32 %v699, %v475
        %702 = vrot.lane.b32.xlu0 %v660, 113
        %v703 = vpop.permute.xlu0 %702
        %704 = vrot.lane.b32.xlu0 %v661, 113
        %v705 = vpop.permute.xlu0 %704
        %v706 = vsel %vm482, %v703, %v705
        %v707 = vsel %vm482, %v705, %v703
        %v708 = vmul.f32 %v706, %v488
        %v709 = vmul.f32 %v707, %v492
        %710 = vrot.lane.b32.xlu0 %v660, 112
        %v711 = vpop.permute.xlu0 %710
        %712 = vrot.lane.b32.xlu0 %v661, 112
        %v713 = vpop.permute.xlu0 %712
        %v714 = vsel %vm499, %v711, %v713
        %v715 = vsel %vm499, %v713, %v711
        %v716 = vmul.f32 %v714, %v505
        %v717 = vmul.f32 %v715, %v509
        %718 = vrot.lane.b32.xlu0 %v660, 111
        %v719 = vpop.permute.xlu0 %718
        %720 = vrot.lane.b32.xlu0 %v661, 111
        %v721 = vpop.permute.xlu0 %720
        %v722 = vsel %vm516, %v719, %v721
        %v723 = vsel %vm516, %v721, %v719
        %v724 = vmul.f32 %v722, %v522
        %v725 = vmul.f32 %v723, %v526
        %v726 = vld [vmem:[%s5] sm:$0xff]
        %vm727 = vcmask 588800
        %v729 = vsel %vm727, %v726, 0
        %731 = vmatprep.subr.mxu0 0.0
        %732 = vmatpush1.msra.mxu0 0.0
        %733 = vmatprep.subr.mxu0 0.0
        %734 = vmatpush1.msra.mxu0 0.0
        %735 = vmatprep.subr.mxu0 0.0
        %736 = vmatpush1.msra.mxu0 0.0
        %737 = vmatprep.subr.mxu0 0.0
        %738 = vmatpush1.msra.mxu0 0.0
        %739 = vmatprep.subr.mxu0 0.0
        %740 = vmatpush1.msra.mxu0 0.0
        %741 = vmatprep.subr.mxu0 0.0
        %742 = vmatpush1.msra.mxu0 0.0
        %743 = vmatprep.subr.mxu0 0.0
        %744 = vmatpush1.msra.mxu0 0.0
        %745 = vmatprep.subr.mxu0 %v725
        %746 = vmatpush1.msra.mxu0 %v724
        %747 = vmatprep.subr.mxu0 %v717
        %748 = vmatpush1.msra.mxu0 %v716
        %749 = vmatprep.subr.mxu0 %v709
        %750 = vmatpush1.msra.mxu0 %v708
        %751 = vmatprep.subr.mxu0 %v701
        %752 = vmatpush1.msra.mxu0 %v700
        %753 = vmatprep.subr.mxu0 %v661
        %754 = vmatpush1.msra.mxu0 %v660
        %755 = vmatprep.subr.mxu0 %v693
        %756 = vmatpush1.msra.mxu0 %v692
        %757 = vmatprep.subr.mxu0 %v685
        %758 = vmatpush1.msra.mxu0 %v684
        %759 = vmatprep.subr.mxu0 %v677
        %760 = vmatpush1.msra.mxu0 %v676
        %761 = vmatprep.subr.mxu0 %v669
        %762 = vmatpush1.msra.mxu0 %v668
        %763 = vmatprep.subr.mxu0 0.0
        %764 = vmatpush2.msra.mxu0 0.0
        %765 = vmatprep.subr.mxu0 0.0
        %766 = vmatpush2.msra.mxu0 0.0
        %767 = vmatprep.subr.mxu0 0.0
        %768 = vmatpush2.msra.mxu0 0.0
        %769 = vmatprep.subr.mxu0 0.0
        %770 = vmatpush2.msra.mxu0 0.0
        %771 = vmatprep.subr.mxu0 0.0
        %772 = vmatpush2.msra.mxu0 0.0
        %773 = vmatprep.subr.mxu0 0.0
        %774 = vmatpush2.msra.mxu0 0.0
        %775 = vmatprep.subr.mxu0 0.0
        %776 = vmatpush2.msra.mxu0 0.0
        %777 = vmatprep.subr.mxu0 0.0
        %778 = vmatpush2.msra.mxu0 0.0
        %779 = vmatprep.subr.mxu0 0.0
        %780 = vmatpush2.msra.mxu0 0.0
        %781 = vmatprep.subr.mxu0 0.0
        %782 = vmatpush2.msra.mxu0 0.0
        %783 = vmatprep.subr.mxu0 0.0
        %784 = vmatpush2.msra.mxu0 0.0
        %785 = vmatprep.subr.mxu0 0.0
        %786 = vmatpush2.msra.mxu0 0.0
        %787 = vmatprep.subr.mxu0 0.0
        %788 = vmatpush2.msra.mxu0 0.0
        %789 = vmatprep.subr.mxu0 0.0
        %790 = vmatpush2.msra.mxu0 0.0
        %791 = vmatprep.subr.mxu0 0.0
        %792 = vmatpush2.msra.mxu0 0.0
        %793 = vmatprep.subr.mxu0 0.0
        %794 = vmatpush2.msra.mxu0 0.0
        %795 = vmatprep.mubr.f32.mxu0 0.0
        %796 = vmatmul.mubr.f32.gmra.mxu0 %v729
        %v797 = vpop.f32.mrf.mxu0
        %v798 = vadd.f32 0.0, %v797
        %v799 = vpop.f32.mrf.mxu0
        %v800 = vadd.f32 0.0, %v799
        %801 = vdwg.mxu0
        %v802 = vld [vmem:[%s6] sm:$0xff]
        %804 = vset.pattern.permute.xlu0 0
        %805 = vperm.xlu0 %804, %v802
        %v806 = vpop.permute.xlu0 %805
        %v808 = vmul.f32 %v798, %v806
        %v809 = vmul.f32 %v800, %v806
        %v810 = vld [vmem:[%s7] sm:$0xff]
        %812 = vset.pattern.permute.xlu0 0
        %813 = vperm.xlu0 %812, %v810
        %v814 = vpop.permute.xlu0 %813
        %v816 = vadd.f32 %v808, %v814
        %v817 = vadd.f32 %v809, %v814
        %v818 = vld [vmem:[%s8] sm:$0xff]
        %vm819 = vcmask 31744
        %v821 = vsel %vm819, %v818, 0
        %v823 = vsel %vm553, %v385, 0
        %v825 = vsel %vm553, %v389, 0
        %827 = vmatprep.subr.mxu0 0.0
        %828 = vmatpush1.msra.mxu0 0.0
        %829 = vmatprep.subr.mxu0 0.0
        %830 = vmatpush1.msra.mxu0 0.0
        %831 = vmatprep.subr.mxu0 0.0
        %832 = vmatpush1.msra.mxu0 0.0
        %833 = vmatprep.subr.mxu0 0.0
        %834 = vmatpush1.msra.mxu0 0.0
        %835 = vmatprep.subr.mxu0 0.0
        %836 = vmatpush1.msra.mxu0 0.0
        %837 = vmatprep.subr.mxu0 0.0
        %838 = vmatpush1.msra.mxu0 0.0
        %839 = vmatprep.subr.mxu0 0.0
        %840 = vmatpush1.msra.mxu0 0.0
        %841 = vmatprep.subr.mxu0 0.0
        %842 = vmatpush1.msra.mxu0 0.0
        %843 = vmatprep.subr.mxu0 0.0
        %844 = vmatpush1.msra.mxu0 0.0
        %845 = vmatprep.subr.mxu0 0.0
        %846 = vmatpush1.msra.mxu0 0.0
        %847 = vmatprep.subr.mxu0 0.0
        %848 = vmatpush1.msra.mxu0 0.0
        %849 = vmatprep.subr.mxu0 0.0
        %850 = vmatpush1.msra.mxu0 0.0
        %851 = vmatprep.subr.mxu0 0.0
        %852 = vmatpush1.msra.mxu0 0.0
        %853 = vmatprep.subr.mxu0 0.0
        %854 = vmatpush1.msra.mxu0 0.0
        %855 = vmatprep.subr.mxu0 0.0
        %856 = vmatpush1.msra.mxu0 0.0
        %857 = vmatprep.subr.mxu0 %v825
        %858 = vmatpush1.msra.mxu0 %v823
        %859 = vmatprep.subr.mxu0 0.0
        %860 = vmatpush2.msra.mxu0 0.0
        %861 = vmatprep.subr.mxu0 0.0
        %862 = vmatpush2.msra.mxu0 0.0
        %863 = vmatprep.subr.mxu0 0.0
        %864 = vmatpush2.msra.mxu0 0.0
        %865 = vmatprep.subr.mxu0 0.0
        %866 = vmatpush2.msra.mxu0 0.0
        %867 = vmatprep.subr.mxu0 0.0
        %868 = vmatpush2.msra.mxu0 0.0
        %869 = vmatprep.subr.mxu0 0.0
        %870 = vmatpush2.msra.mxu0 0.0
        %871 = vmatprep.subr.mxu0 0.0
        %872 = vmatpush2.msra.mxu0 0.0
        %873 = vmatprep.subr.mxu0 0.0
        %874 = vmatpush2.msra.mxu0 0.0
        %875 = vmatprep.subr.mxu0 0.0
        %876 = vmatpush2.msra.mxu0 0.0
        %877 = vmatprep.subr.mxu0 0.0
        %878 = vmatpush2.msra.mxu0 0.0
        %879 = vmatprep.subr.mxu0 0.0
        %880 = vmatpush2.msra.mxu0 0.0
        %881 = vmatprep.subr.mxu0 0.0
        %882 = vmatpush2.msra.mxu0 0.0
        %883 = vmatprep.subr.mxu0 0.0
        %884 = vmatpush2.msra.mxu0 0.0
        %885 = vmatprep.subr.mxu0 0.0
        %886 = vmatpush2.msra.mxu0 0.0
        %887 = vmatprep.subr.mxu0 0.0
        %888 = vmatpush2.msra.mxu0 0.0
        %889 = vmatprep.subr.mxu0 0.0
        %890 = vmatpush2.msra.mxu0 0.0
        %891 = vmatprep.mubr.f32.mxu0 0.0
        %892 = vmatmul.mubr.f32.gmra.mxu0 %v821
        %v893 = vpop.f32.mrf.mxu0
        %v894 = vadd.f32 0.0, %v893
        %v895 = vpop.f32.mrf.mxu0
        %v896 = vadd.f32 0.0, %v895
        %897 = vdwg.mxu0
        %v898 = vld [vmem:[%s9] sm:$0xff]
        %900 = vset.pattern.permute.xlu0 0
        %901 = vperm.xlu0 %900, %v898
        %v902 = vpop.permute.xlu0 %901
        %v904 = vmul.f32 %v894, %v902
        %v905 = vmul.f32 %v896, %v902
        %v906 = vld [vmem:[%s10] sm:$0xff]
        %908 = vset.pattern.permute.xlu0 0
        %909 = vperm.xlu0 %908, %v906
        %v910 = vpop.permute.xlu0 %909
        %v912 = vadd.f32 %v904, %v910
        %v913 = vadd.f32 %v905, %v910
        %v914 = vadd.f32 %v816, %v912
        %v915 = vadd.f32 %v817, %v913
        %v916 = vmax.f32 %v914, 0.0
        %v917 = vmax.f32 %v915, 0.0
        %918 = vst [vmem:[%s379] sm:$0xff] %v916
        %919 = vst [vmem:[%s379 + $0x8] sm:$0xff] %v917
        %s920 = sand.u32 %s269, 1
        %s921 = scalar_lea.sflag [#allocation3], %s920
        %s922 = sand.u32 %s269, 1
        %s923 = smul.addr %s922, 16
        %s924 = scalar_lea.vmem [#allocation2], %s923
        // Predicated region
        $region65: #{tpu_custom_call.1} parent=63 // pred_check
          %p925 = pneg %p279
        $region66: #{tpu_custom_call.1} parent=63 // pred_check_branch
          %927 = sbr.rel (%p925) target = $region68
        $region67: #{tpu_custom_call.1} parent=63 // pred_region
          %s929 = ssub.s32 256, 256
          %930 = vsyncadd %s921, %s929
          %s931 = smul.addr %s25, 2
          %s932 = smul.addr %s931, 128
          %s933 = scalar_lea.hbm %s11, %s932
          %s935 = sshll.u32 %s924, 4
          %s936 = int_to_ptr.vmem [resolvable:$true] %s935
          %938 = dma.vmem_to_hbm [thread:$0]  %s936, 256, %s933, %s921
        $region68: #{tpu_custom_call.1} parent=63 // pred_fallthru
          _
      $region64: #{tpu_custom_call.1} parent=5 // pred_fallthru
        _
      %p939 = scmp.le.s32.totalorder 2, %s20
      // Predicated region
      $region69: #{tpu_custom_call.1} parent=5 // pred_check
        %p940 = pneg %p939
      $region70: #{tpu_custom_call.1} parent=5 // pred_check_branch
        %942 = sbr.rel (%p940) target = $region72
      $region71: #{tpu_custom_call.1} parent=5 // pred_region
        %s943 = ssub.s32 %s20, 2
        // Predicated region
        $region73: #{tpu_custom_call.1} parent=71 // pred_check
          %p944 = pneg %p285
        $region74: #{tpu_custom_call.1} parent=71 // pred_check_branch
          %946 = sbr.rel (%p944) target = $region76
        $region75: #{tpu_custom_call.1} parent=71 // pred_region
          %s947 = sand.u32 %s270, 1
          %s948 = scalar_lea.sflag [#allocation3], %s947
          %s949 = sand.u32 %s270, 1
          %s950 = smul.addr %s949, 16
          %s951 = scalar_lea.vmem [#allocation2], %s950
          %952 = dma.done %s948, 256
        $region76: #{tpu_custom_call.1} parent=71 // pred_fallthru
          _
      $region72: #{tpu_custom_call.1} parent=5 // pred_fallthru
        _
    $region6: #{tpu_custom_call.1} parent=1 // loop_footer
      %s24 = sadd.s32 1, %s20
    $region7: #{tpu_custom_call.1} parent=1 // loop_footer_branch
      %19 = sbr.rel target = $region3
    $region8: #{tpu_custom_call.1} parent=1 // loop_exit
      _
    %953 = vsyncpa [#allocation3], 1
    %s954 = scalar_lea.sflag [#allocation3], 1
    %955 = vsyncpa %s954, 1

</llo_original>
